<compile_context>
chip_gen: v5e
topology: v5e:2x2
jax: 0.10.0
libtpu: 0.0.40
codegen_flags: <defaults>
</compile_context>

<pallas_src>
import functools

import jax
import jax.numpy as jnp
from jax.experimental import pallas as pl
from jax.experimental.pallas import tpu as pltpu


def _a2c_actor_kernel(x_ref,
                      w1_ref, b1_ref, w2_ref, b2_ref, w3_ref, b3_ref,
                      w4_ref, b4_ref, w5_ref, b5_ref,
                      o_ref):
    def linear(h_f32, w_ref, b_ref):
        # bf16 MXU inputs, f32 accumulation, f32 bias add.
        return (
            jnp.dot(h_f32.astype(jnp.bfloat16), w_ref[...],
                    preferred_element_type=jnp.float32)
            + b_ref[...]
        )

    # ---- shared MLP ----
    h = jnp.tanh(linear(x_ref[...].astype(jnp.float32), w1_ref, b1_ref))
    h = jnp.tanh(linear(h, w2_ref, b2_ref))
    h = jnp.tanh(linear(h, w3_ref, b3_ref))

    # ---- actor head (fused) ----
    h = jnp.tanh(linear(h, w4_ref, b4_ref))
    logits = linear(h, w5_ref, b5_ref)

    # Softmax over the action axis (f32, numerically stable).
    m = jnp.max(logits, axis=-1, keepdims=True)
    e = jnp.exp(logits - m)
    s = jnp.sum(e, axis=-1, keepdims=True)
    o_ref[...] = (e / s).astype(o_ref.dtype)


def _round_up(n, m):
    return ((n + m - 1) // m) * m


@functools.partial(jax.jit, static_argnames=("batch_tile",))
def a2c_actor_forward(x, params, *, batch_tile=256):
    """Full A2CActor forward pass (shared MLP + actor head + softmax) in one kernel.

    x: (B, state_size) float32
    params: dict with
        w1 (S,H1) bf16,  b1 (1,H1) f32
        w2 (H1,H2) bf16, b2 (1,H2) f32
        w3 (H2,H2) bf16, b3 (1,H2) f32
        w4 (H2,H2) bf16, b4 (1,H2) f32   (actor hidden)
        w5 (H2,A) bf16,  b5 (1,A)  f32   (actor output)
    returns: (B, A) float32 action probabilities.
    """
    w1, b1 = params["w1"], params["b1"]
    w2, b2 = params["w2"], params["b2"]
    w3, b3 = params["w3"], params["b3"]
    w4, b4 = params["w4"], params["b4"]
    w5, b5 = params["w5"], params["b5"]

    B, S = x.shape
    H1 = w1.shape[1]
    H2 = w3.shape[1]
    A = w5.shape[1]

    # Row tile: multiple of 8 (f32 sublane), capped at batch_tile.
    tb = min(_round_up(B, 8), batch_tile)
    b_pad = _round_up(B, tb)
    if b_pad != B:
        x = jnp.pad(x, ((0, b_pad - B), (0, 0)))
    num_tiles = b_pad // tb

    resident = lambda arr: pl.BlockSpec(arr.shape, lambda i: (0, 0))

    weight_bytes = sum(a.size * a.dtype.itemsize
                       for a in (w1, b1, w2, b2, w3, b3, w4, b4, w5, b5))
    cost = pl.CostEstimate(
        flops=2 * b_pad * (S * H1 + H1 * H2 + H2 * H2 + H2 * H2 + H2 * A),
        transcendentals=b_pad * (H1 + 3 * H2 + A),
        bytes_accessed=x.size * x.dtype.itemsize + weight_bytes + b_pad * A * 4,
    )

    out = pl.pallas_call(
        _a2c_actor_kernel,
        out_shape=jax.ShapeDtypeStruct((b_pad, A), jnp.float32),
        grid=(num_tiles,),
        in_specs=[
            pl.BlockSpec((tb, S), lambda i: (i, 0)),   # x: tiled over batch rows
            resident(w1), resident(b1),
            resident(w2), resident(b2),
            resident(w3), resident(b3),
            resident(w4), resident(b4),
            resident(w5), resident(b5),
        ],
        out_specs=pl.BlockSpec((tb, A), lambda i: (i, 0)),
        compiler_params=pltpu.CompilerParams(
            dimension_semantics=("parallel",),
        ),
        cost_estimate=cost,
    )(x, w1, b1, w2, b2, w3, b3, w4, b4, w5, b5)

    return out[:B]


def init_a2c_actor_params(key, state_size, action_size, hidsize1=512, hidsize2=256):
    """PyTorch-nn.Linear-style init (U[-1/sqrt(fan_in), +]); weights cast to bf16."""
    ks = jax.random.split(key, 10)

    def linear(kw, kb, fan_in, fan_out):
        bound = 1.0 / jnp.sqrt(jnp.float32(fan_in))
        w = jax.random.uniform(kw, (fan_in, fan_out), jnp.float32, -bound, bound)
        b = jax.random.uniform(kb, (1, fan_out), jnp.float32, -bound, bound)
        return w.astype(jnp.bfloat16), b  # bf16 weights, f32 biases

    w1, b1 = linear(ks[0], ks[1], state_size, hidsize1)
    w2, b2 = linear(ks[2], ks[3], hidsize1, hidsize2)
    w3, b3 = linear(ks[4], ks[5], hidsize2, hidsize2)
    w4, b4 = linear(ks[6], ks[7], hidsize2, hidsize2)
    w5, b5 = linear(ks[8], ks[9], hidsize2, action_size)
    return {"w1": w1, "b1": b1, "w2": w2, "b2": b2, "w3": w3, "b3": b3,
            "w4": w4, "b4": b4, "w5": w5, "b5": b5}


def a2c_actor_ref(x, params):
    """Pure-JAX reference using the same bf16-weight / f32-accumulate recipe."""
    def lin(h, w, b):
        return jnp.dot(h.astype(jnp.bfloat16), w,
                       preferred_element_type=jnp.float32) + b

    h = jnp.tanh(lin(x, params["w1"], params["b1"]))
    h = jnp.tanh(lin(h, params["w2"], params["b2"]))
    h = jnp.tanh(lin(h, params["w3"], params["b3"]))
    h = jnp.tanh(lin(h, params["w4"], params["b4"]))
    logits = lin(h, params["w5"], params["b5"])
    return jax.nn.softmax(logits, axis=-1)


if __name__ == "__main__":
    key = jax.random.PRNGKey(0)
    k_x, k_p = jax.random.split(key)

    batch = 8
    state_size = 32
    action_size = 5
    hidsize1 = 512
    hidsize2 = 256

    x = jax.random.normal(k_x, (batch, state_size), jnp.float32)
    params = init_a2c_actor_params(k_p, state_size, action_size, hidsize1, hidsize2)

    out = a2c_actor_forward(x, params)
    out = jax.block_until_ready(out)

    ref = a2c_actor_ref(x, params)
    assert out.shape == (batch, action_size), out.shape
    assert jnp.allclose(out, ref, atol=1e-4, rtol=1e-4), "mismatch vs reference"
    assert jnp.allclose(jnp.sum(out, axis=-1), 1.0, atol=1e-5), "probs do not sum to 1"

    print("KERNEL_OK")
</pallas_src>

<mosaic_0001>
module attributes {stable_mosaic.version = 11 : i64} {
  func.func @_a2c_actor_kernel(%arg0: i32, %arg1: memref<8x32xf32, #tpu.memory_space<vmem>>, %arg2: memref<32x512xbf16, #tpu.memory_space<vmem>>, %arg3: memref<1x512xf32, #tpu.memory_space<vmem>>, %arg4: memref<512x256xbf16, #tpu.memory_space<vmem>>, %arg5: memref<1x256xf32, #tpu.memory_space<vmem>>, %arg6: memref<256x256xbf16, #tpu.memory_space<vmem>>, %arg7: memref<1x256xf32, #tpu.memory_space<vmem>>, %arg8: memref<256x256xbf16, #tpu.memory_space<vmem>>, %arg9: memref<1x256xf32, #tpu.memory_space<vmem>>, %arg10: memref<256x5xbf16, #tpu.memory_space<vmem>>, %arg11: memref<1x5xf32, #tpu.memory_space<vmem>>, %arg12: memref<8x5xf32, #tpu.memory_space<vmem>>) attributes {dimension_semantics = [#tpu.dimension_semantics<parallel>], iteration_bounds = array<i64: 1>, scalar_prefetch = 0 : i64, scratch_operands = 0 : i64, tpu.core_type = #tpu.core_type<tc>, window_params = [{transform_indices = @transform_0, window_bounds = array<i64: 8, 32>}, {pipeline_mode = #tpu.pipeline_mode<synchronous>, transform_indices = @transform_1, window_bounds = array<i64: 32, 512>}, {pipeline_mode = #tpu.pipeline_mode<synchronous>, transform_indices = @transform_2, window_bounds = array<i64: 1, 512>}, {pipeline_mode = #tpu.pipeline_mode<synchronous>, transform_indices = @transform_3, window_bounds = array<i64: 512, 256>}, {pipeline_mode = #tpu.pipeline_mode<synchronous>, transform_indices = @transform_4, window_bounds = array<i64: 1, 256>}, {pipeline_mode = #tpu.pipeline_mode<synchronous>, transform_indices = @transform_5, window_bounds = array<i64: 256, 256>}, {pipeline_mode = #tpu.pipeline_mode<synchronous>, transform_indices = @transform_6, window_bounds = array<i64: 1, 256>}, {pipeline_mode = #tpu.pipeline_mode<synchronous>, transform_indices = @transform_7, window_bounds = array<i64: 256, 256>}, {pipeline_mode = #tpu.pipeline_mode<synchronous>, transform_indices = @transform_8, window_bounds = array<i64: 1, 256>}, {pipeline_mode = #tpu.pipeline_mode<synchronous>, transform_indices = @transform_9, window_bounds = array<i64: 256, 5>}, {pipeline_mode = #tpu.pipeline_mode<synchronous>, transform_indices = @transform_10, window_bounds = array<i64: 1, 5>}, {transform_indices = @transform_11, window_bounds = array<i64: 8, 5>}]} {
    %c0 = arith.constant 0 : index
    %c0_0 = arith.constant 0 : index
    %0 = vector.load %arg1[%c0, %c0_0] : memref<8x32xf32, #tpu.memory_space<vmem>>, vector<8x32xf32>
    %1 = arith.truncf %0 : vector<8x32xf32> to vector<8x32xbf16>
    %c0_1 = arith.constant 0 : index
    %c0_2 = arith.constant 0 : index
    %2 = vector.load %arg2[%c0_1, %c0_2] : memref<32x512xbf16, #tpu.memory_space<vmem>>, vector<32x512xbf16>
    %cst = arith.constant dense<0.000000e+00> : vector<8x512xf32>
    %3 = tpu.matmul %1, %2, %cst {dimension_numbers = #tpu.dot_dimension_numbers<[1], [0], [0], [1], [0, 0, 1, 1], [], []>} : vector<8x32xbf16>, vector<32x512xbf16>, vector<8x512xf32> -> vector<8x512xf32>
    %c0_3 = arith.constant 0 : index
    %c0_4 = arith.constant 0 : index
    %4 = vector.load %arg3[%c0_3, %c0_4] : memref<1x512xf32, #tpu.memory_space<vmem>>, vector<1x512xf32>
    %5 = vector.broadcast %4 : vector<1x512xf32> to vector<8x512xf32>
    %6 = arith.addf %3, %5 : vector<8x512xf32>
    %7 = math.tanh %6 : vector<8x512xf32>
    %8 = arith.truncf %7 : vector<8x512xf32> to vector<8x512xbf16>
    %c0_5 = arith.constant 0 : index
    %c0_6 = arith.constant 0 : index
    %9 = vector.load %arg4[%c0_5, %c0_6] : memref<512x256xbf16, #tpu.memory_space<vmem>>, vector<512x256xbf16>
    %cst_7 = arith.constant dense<0.000000e+00> : vector<8x256xf32>
    %10 = tpu.matmul %8, %9, %cst_7 {dimension_numbers = #tpu.dot_dimension_numbers<[1], [0], [0], [1], [0, 0, 1, 1], [], []>} : vector<8x512xbf16>, vector<512x256xbf16>, vector<8x256xf32> -> vector<8x256xf32>
    %c0_8 = arith.constant 0 : index
    %c0_9 = arith.constant 0 : index
    %11 = vector.load %arg5[%c0_8, %c0_9] : memref<1x256xf32, #tpu.memory_space<vmem>>, vector<1x256xf32>
    %12 = vector.broadcast %11 : vector<1x256xf32> to vector<8x256xf32>
    %13 = arith.addf %10, %12 : vector<8x256xf32>
    %14 = math.tanh %13 : vector<8x256xf32>
    %15 = arith.truncf %14 : vector<8x256xf32> to vector<8x256xbf16>
    %c0_10 = arith.constant 0 : index
    %c0_11 = arith.constant 0 : index
    %16 = vector.load %arg6[%c0_10, %c0_11] : memref<256x256xbf16, #tpu.memory_space<vmem>>, vector<256x256xbf16>
    %cst_12 = arith.constant dense<0.000000e+00> : vector<8x256xf32>
    %17 = tpu.matmul %15, %16, %cst_12 {dimension_numbers = #tpu.dot_dimension_numbers<[1], [0], [0], [1], [0, 0, 1, 1], [], []>} : vector<8x256xbf16>, vector<256x256xbf16>, vector<8x256xf32> -> vector<8x256xf32>
    %c0_13 = arith.constant 0 : index
    %c0_14 = arith.constant 0 : index
    %18 = vector.load %arg7[%c0_13, %c0_14] : memref<1x256xf32, #tpu.memory_space<vmem>>, vector<1x256xf32>
    %19 = vector.broadcast %18 : vector<1x256xf32> to vector<8x256xf32>
    %20 = arith.addf %17, %19 : vector<8x256xf32>
    %21 = math.tanh %20 : vector<8x256xf32>
    %22 = arith.truncf %21 : vector<8x256xf32> to vector<8x256xbf16>
    %c0_15 = arith.constant 0 : index
    %c0_16 = arith.constant 0 : index
    %23 = vector.load %arg8[%c0_15, %c0_16] : memref<256x256xbf16, #tpu.memory_space<vmem>>, vector<256x256xbf16>
    %cst_17 = arith.constant dense<0.000000e+00> : vector<8x256xf32>
    %24 = tpu.matmul %22, %23, %cst_17 {dimension_numbers = #tpu.dot_dimension_numbers<[1], [0], [0], [1], [0, 0, 1, 1], [], []>} : vector<8x256xbf16>, vector<256x256xbf16>, vector<8x256xf32> -> vector<8x256xf32>
    %c0_18 = arith.constant 0 : index
    %c0_19 = arith.constant 0 : index
    %25 = vector.load %arg9[%c0_18, %c0_19] : memref<1x256xf32, #tpu.memory_space<vmem>>, vector<1x256xf32>
    %26 = vector.broadcast %25 : vector<1x256xf32> to vector<8x256xf32>
    %27 = arith.addf %24, %26 : vector<8x256xf32>
    %28 = math.tanh %27 : vector<8x256xf32>
    %29 = arith.truncf %28 : vector<8x256xf32> to vector<8x256xbf16>
    %c0_20 = arith.constant 0 : index
    %c0_21 = arith.constant 0 : index
    %30 = vector.load %arg10[%c0_20, %c0_21] : memref<256x5xbf16, #tpu.memory_space<vmem>>, vector<256x5xbf16>
    %cst_22 = arith.constant dense<0.000000e+00> : vector<8x5xf32>
    %31 = tpu.matmul %29, %30, %cst_22 {dimension_numbers = #tpu.dot_dimension_numbers<[1], [0], [0], [1], [0, 0, 1, 1], [], []>} : vector<8x256xbf16>, vector<256x5xbf16>, vector<8x5xf32> -> vector<8x5xf32>
    %c0_23 = arith.constant 0 : index
    %c0_24 = arith.constant 0 : index
    %32 = vector.load %arg11[%c0_23, %c0_24] : memref<1x5xf32, #tpu.memory_space<vmem>>, vector<1x5xf32>
    %33 = vector.broadcast %32 : vector<1x5xf32> to vector<8x5xf32>
    %34 = arith.addf %31, %33 : vector<8x5xf32>
    %cst_25 = arith.constant dense<0xFF800000> : vector<8xf32>
    %35 = vector.multi_reduction <maximumf>, %34, %cst_25 [1] : vector<8x5xf32> to vector<8xf32>
    %36 = vector.shape_cast %35 : vector<8xf32> to vector<8x1xf32>
    %37 = vector.broadcast %36 : vector<8x1xf32> to vector<8x5xf32>
    %38 = arith.subf %34, %37 : vector<8x5xf32>
    %39 = math.exp %38 : vector<8x5xf32>
    %cst_26 = arith.constant dense<0.000000e+00> : vector<8xf32>
    %40 = vector.multi_reduction <add>, %39, %cst_26 [1] : vector<8x5xf32> to vector<8xf32>
    %41 = vector.shape_cast %40 : vector<8xf32> to vector<8x1xf32>
    %42 = vector.broadcast %41 : vector<8x1xf32> to vector<8x5xf32>
    %43 = arith.divf %39, %42 : vector<8x5xf32>
    %c0_27 = arith.constant 0 : index
    %c0_28 = arith.constant 0 : index
    %44 = vector.load %arg12[%c0_27, %c0_28] : memref<8x5xf32, #tpu.memory_space<vmem>>, vector<8x5xf32>
    tpu.vector_store %arg12[%c0_27, %c0_28], %43 {strides = array<i32>} : memref<8x5xf32, #tpu.memory_space<vmem>>, vector<8x5xf32>,
    return
  }
  func.func @transform_0(%arg0: i32) -> (i32, i32) {
    %c0_i32 = arith.constant 0 : i32
    %c0_i32_0 = arith.constant 0 : i32
    return %arg0, %c0_i32 : i32, i32
  }
  func.func @transform_1(%arg0: i32) -> (i32, i32) {
    %c0_i32 = arith.constant 0 : i32
    %c0_i32_0 = arith.constant 0 : i32
    %c0_i32_1 = arith.constant 0 : i32
    return %c0_i32, %c0_i32_0 : i32, i32
  }
  func.func @transform_2(%arg0: i32) -> (i32, i32) {
    %c0_i32 = arith.constant 0 : i32
    %c0_i32_0 = arith.constant 0 : i32
    %c0_i32_1 = arith.constant 0 : i32
    return %c0_i32, %c0_i32_0 : i32, i32
  }
  func.func @transform_3(%arg0: i32) -> (i32, i32) {
    %c0_i32 = arith.constant 0 : i32
    %c0_i32_0 = arith.constant 0 : i32
    %c0_i32_1 = arith.constant 0 : i32
    return %c0_i32, %c0_i32_0 : i32, i32
  }
  func.func @transform_4(%arg0: i32) -> (i32, i32) {
    %c0_i32 = arith.constant 0 : i32
    %c0_i32_0 = arith.constant 0 : i32
    %c0_i32_1 = arith.constant 0 : i32
    return %c0_i32, %c0_i32_0 : i32, i32
  }
  func.func @transform_5(%arg0: i32) -> (i32, i32) {
    %c0_i32 = arith.constant 0 : i32
    %c0_i32_0 = arith.constant 0 : i32
    %c0_i32_1 = arith.constant 0 : i32
    return %c0_i32, %c0_i32_0 : i32, i32
  }
  func.func @transform_6(%arg0: i32) -> (i32, i32) {
    %c0_i32 = arith.constant 0 : i32
    %c0_i32_0 = arith.constant 0 : i32
    %c0_i32_1 = arith.constant 0 : i32
    return %c0_i32, %c0_i32_0 : i32, i32
  }
  func.func @transform_7(%arg0: i32) -> (i32, i32) {
    %c0_i32 = arith.constant 0 : i32
    %c0_i32_0 = arith.constant 0 : i32
    %c0_i32_1 = arith.constant 0 : i32
    return %c0_i32, %c0_i32_0 : i32, i32
  }
  func.func @transform_8(%arg0: i32) -> (i32, i32) {
    %c0_i32 = arith.constant 0 : i32
    %c0_i32_0 = arith.constant 0 : i32
    %c0_i32_1 = arith.constant 0 : i32
    return %c0_i32, %c0_i32_0 : i32, i32
  }
  func.func @transform_9(%arg0: i32) -> (i32, i32) {
    %c0_i32 = arith.constant 0 : i32
    %c0_i32_0 = arith.constant 0 : i32
    %c0_i32_1 = arith.constant 0 : i32
    return %c0_i32, %c0_i32_0 : i32, i32
  }
  func.func @transform_10(%arg0: i32) -> (i32, i32) {
    %c0_i32 = arith.constant 0 : i32
    %c0_i32_0 = arith.constant 0 : i32
    %c0_i32_1 = arith.constant 0 : i32
    return %c0_i32, %c0_i32_0 : i32, i32
  }
  func.func @transform_11(%arg0: i32) -> (i32, i32) {
    %c0_i32 = arith.constant 0 : i32
    %c0_i32_0 = arith.constant 0 : i32
    return %arg0, %c0_i32 : i32, i32
  }
}

</mosaic_0001>

<llo_original>
// kernel: a2c_actor_forward.1
$region0: #{a2c_actor_forward.1}
  #allocation0 [shape = 'u32[]', space=smem, size = 0x4, offset = 0x4, fixed_abs, tag = 'smem constant byte address 0x4 - core index']
  #allocation1 [shape = 'u32[72,128]{1,0:T(1,128)}', space=vmem, size = 0x9000, scoped, tag = 'internal scratch']
  %s0 = inlined_call_operand.vmem [shape: f32[8,32], index: 0, kind: input, shape index: {}]
  %s1 = inlined_call_operand.vmem [shape: bf16[32,512], index: 1, kind: input, shape index: {}]
  %s2 = inlined_call_operand.vmem [shape: f32[1,512], index: 2, kind: input, shape index: {}]
  %s3 = inlined_call_operand.hbm [shape: bf16[512,256], index: 3, kind: input, shape index: {}]
  %s4 = inlined_call_operand.vmem [shape: f32[1,256], index: 4, kind: input, shape index: {}]
  %s5 = inlined_call_operand.hbm [shape: bf16[256,256], index: 5, kind: input, shape index: {}]
  %s6 = inlined_call_operand.vmem [shape: f32[1,256], index: 6, kind: input, shape index: {}]
  %s7 = inlined_call_operand.hbm [shape: bf16[256,256], index: 7, kind: input, shape index: {}]
  %s8 = inlined_call_operand.vmem [shape: f32[1,256], index: 8, kind: input, shape index: {}]
  %s9 = inlined_call_operand.vmem [shape: bf16[256,5], index: 9, kind: input, shape index: {}]
  %s10 = inlined_call_operand.vmem [shape: f32[1,5], index: 10, kind: input, shape index: {}]
  %s11 = inlined_call_operand.hbm [shape: f32[8,5], index: 11, kind: output, shape index: {}]
  %s12 = sld [smem:[#allocation0]]
  $region66: #{a2c_actor_forward.1} parent=0
    _
  %s14 = ssub.s32 1, %s12
  %s15 = scalar_select 0, %s14, %s12
  $region1: #{a2c_actor_forward.1} parent=0
    #allocation2 [shape = 'u8[262144]{0}', space=vmem, size = 0x40000, scoped, tag = 'input window, operand 3, single buffered']
    #allocation3 [shape = 's32[1]{0}', space=sflag, size = 0x4, scoped, tag = 'scoped memory for a2c_actor_forward.1']
    #allocation4 [shape = 's32[1]{0}', space=sflag, size = 0x4, scoped, tag = 'scoped memory for a2c_actor_forward.1']
    #allocation5 [shape = 'u8[131072]{0}', space=vmem, size = 0x20000, scoped, tag = 'input window, operand 5, single buffered']
    #allocation6 [shape = 's32[1]{0}', space=sflag, size = 0x4, scoped, tag = 'scoped memory for a2c_actor_forward.1']
    #allocation7 [shape = 'u8[131072]{0}', space=vmem, size = 0x20000, scoped, tag = 'input window, operand 7, single buffered']
    #allocation8 [shape = 'u8[4096]{0}', space=vmem, size = 0x1000, scoped, tag = 'output window, operand 0, single buffered']
    %16 = vsyncpa [#allocation3], 0
    %17 = vsyncpa [#allocation6], 0
    %18 = vsyncpa [#allocation4], 0
    // Predicated region
    $region2: #{a2c_actor_forward.1} parent=1 // pred_check
      _
    $region3: #{a2c_actor_forward.1} parent=1 // pred_check_branch
      %20 = sbr.rel (0) target = $region5
    $region4: #{a2c_actor_forward.1} parent=1 // pred_region
      _
    $region5: #{a2c_actor_forward.1} parent=1 // pred_fallthru
      _
    // Predicated region
    $region6: #{a2c_actor_forward.1} parent=1 // pred_check
      _
    $region7: #{a2c_actor_forward.1} parent=1 // pred_check_branch
      %22 = sbr.rel (0) target = $region9
    $region8: #{a2c_actor_forward.1} parent=1 // pred_region
      _
    $region9: #{a2c_actor_forward.1} parent=1 // pred_fallthru
      _
    // Predicated region
    $region10: #{a2c_actor_forward.1} parent=1 // pred_check
      _
    $region11: #{a2c_actor_forward.1} parent=1 // pred_check_branch
      %24 = sbr.rel (0) target = $region13
    $region12: #{a2c_actor_forward.1} parent=1 // pred_region
      _
    $region13: #{a2c_actor_forward.1} parent=1 // pred_fallthru
      _
    // Predicated region
    $region14: #{a2c_actor_forward.1} parent=1 // pred_check
      _
    $region15: #{a2c_actor_forward.1} parent=1 // pred_check_branch
      %26 = sbr.rel (0) target = $region17
    $region16: #{a2c_actor_forward.1} parent=1 // pred_region
      %28 = vsyncadd [#allocation3], 0
      %s29 = sshll.u32 %s3, 4
      %s30 = int_to_ptr.hbm [resolvable:$true] %s29
      %s31 = sshll.u32 [#allocation2], 4
      %s32 = int_to_ptr.vmem [resolvable:$true] %s31
      %37 = dma.hbm_to_vmem [thread:$0]  %s30, 8192, %s32, [#allocation3], 128, 128, 8
    $region17: #{a2c_actor_forward.1} parent=1 // pred_fallthru
      _
    // Predicated region
    $region18: #{a2c_actor_forward.1} parent=1 // pred_check
      _
    $region19: #{a2c_actor_forward.1} parent=1 // pred_check_branch
      %39 = sbr.rel (0) target = $region21
    $region20: #{a2c_actor_forward.1} parent=1 // pred_region
      _
    $region21: #{a2c_actor_forward.1} parent=1 // pred_fallthru
      _
    // Predicated region
    $region22: #{a2c_actor_forward.1} parent=1 // pred_check
      _
    $region23: #{a2c_actor_forward.1} parent=1 // pred_check_branch
      %41 = sbr.rel (0) target = $region25
    $region24: #{a2c_actor_forward.1} parent=1 // pred_region
      %43 = vsyncadd [#allocation6], 0
      %s44 = sshll.u32 %s5, 4
      %s45 = int_to_ptr.hbm [resolvable:$true] %s44
      %s46 = sshll.u32 [#allocation5], 4
      %s47 = int_to_ptr.vmem [resolvable:$true] %s46
      %52 = dma.hbm_to_vmem [thread:$0]  %s45, 4096, %s47, [#allocation6], 128, 128, 8
    $region25: #{a2c_actor_forward.1} parent=1 // pred_fallthru
      _
    // Predicated region
    $region26: #{a2c_actor_forward.1} parent=1 // pred_check
      _
    $region27: #{a2c_actor_forward.1} parent=1 // pred_check_branch
      %54 = sbr.rel (0) target = $region29
    $region28: #{a2c_actor_forward.1} parent=1 // pred_region
      _
    $region29: #{a2c_actor_forward.1} parent=1 // pred_fallthru
      _
    // Predicated region
    $region30: #{a2c_actor_forward.1} parent=1 // pred_check
      _
    $region31: #{a2c_actor_forward.1} parent=1 // pred_check_branch
      %56 = sbr.rel (0) target = $region33
    $region32: #{a2c_actor_forward.1} parent=1 // pred_region
      %58 = vsyncadd [#allocation6], 0
      %s59 = sshll.u32 %s7, 4
      %s60 = int_to_ptr.hbm [resolvable:$true] %s59
      %s61 = sshll.u32 [#allocation7], 4
      %s62 = int_to_ptr.vmem [resolvable:$true] %s61
      %67 = dma.hbm_to_vmem [thread:$0]  %s60, 4096, %s62, [#allocation6], 128, 128, 8
    $region33: #{a2c_actor_forward.1} parent=1 // pred_fallthru
      _
    // Predicated region
    $region34: #{a2c_actor_forward.1} parent=1 // pred_check
      _
    $region35: #{a2c_actor_forward.1} parent=1 // pred_check_branch
      %69 = sbr.rel (0) target = $region37
    $region36: #{a2c_actor_forward.1} parent=1 // pred_region
      _
    $region37: #{a2c_actor_forward.1} parent=1 // pred_fallthru
      _
    // Predicated region
    $region38: #{a2c_actor_forward.1} parent=1 // pred_check
      _
    $region39: #{a2c_actor_forward.1} parent=1 // pred_check_branch
      %71 = sbr.rel (0) target = $region41
    $region40: #{a2c_actor_forward.1} parent=1 // pred_region
      _
    $region41: #{a2c_actor_forward.1} parent=1 // pred_fallthru
      _
    // Predicated region
    $region42: #{a2c_actor_forward.1} parent=1 // pred_check
      _
    $region43: #{a2c_actor_forward.1} parent=1 // pred_check_branch
      %73 = sbr.rel (0) target = $region45
    $region44: #{a2c_actor_forward.1} parent=1 // pred_region
      _
    $region45: #{a2c_actor_forward.1} parent=1 // pred_fallthru
      _
    // Predicated region
    $region46: #{a2c_actor_forward.1} parent=1 // pred_check
      _
    $region47: #{a2c_actor_forward.1} parent=1 // pred_check_branch
      %75 = sbr.rel (0) target = $region49
    $region48: #{a2c_actor_forward.1} parent=1 // pred_region
      %77 = dma.done [#allocation3], 8192
    $region49: #{a2c_actor_forward.1} parent=1 // pred_fallthru
      _
    // Predicated region
    $region50: #{a2c_actor_forward.1} parent=1 // pred_check
      _
    $region51: #{a2c_actor_forward.1} parent=1 // pred_check_branch
      %79 = sbr.rel (0) target = $region53
    $region52: #{a2c_actor_forward.1} parent=1 // pred_region
      %81 = dma.done [#allocation6], 4096
    $region53: #{a2c_actor_forward.1} parent=1 // pred_fallthru
      _
    // Predicated region
    $region54: #{a2c_actor_forward.1} parent=1 // pred_check
      _
    $region55: #{a2c_actor_forward.1} parent=1 // pred_check_branch
      %83 = sbr.rel (0) target = $region57
    $region56: #{a2c_actor_forward.1} parent=1 // pred_region
      %85 = dma.done [#allocation6], 4096
    $region57: #{a2c_actor_forward.1} parent=1 // pred_fallthru
      _
    %v87 = vld [vmem:[%s0] sm:$0xff]
    %v88 = vpack.c.bf16 %v87, %v87
    %v89 = vld [vmem:[%s1] sm:$0xff]
    %v90 = vld [vmem:[%s1 + $0x8] sm:$0xff]
    %v91 = vld [vmem:[%s1 + $0x10] sm:$0xff]
    %v92 = vld [vmem:[%s1 + $0x18] sm:$0xff]
    %v93 = vld [vmem:[%s1 + $0x20] sm:$0xff]
    %v94 = vld [vmem:[%s1 + $0x28] sm:$0xff]
    %v95 = vld [vmem:[%s1 + $0x30] sm:$0xff]
    %v96 = vld [vmem:[%s1 + $0x38] sm:$0xff]
    %v97 = vld [vmem:[%s2] sm:$0xf]
    %v99 = vperm.slane %v97, 0
    %v100 = vperm.slane %v97, 1
    %v101 = vperm.slane %v97, 2
    %v102 = vperm.slane %v97, 3
    %v115 = vunpack.c.l.b16 %v89
    %v116 = vunpack.c.h.b16 %v89
    %v117 = vunpack.c.l.b16 %v90
    %v118 = vunpack.c.h.b16 %v90
    %v119 = vunpack.c.l.b16 %v91
    %v120 = vunpack.c.h.b16 %v91
    %v121 = vunpack.c.l.b16 %v92
    %v122 = vunpack.c.h.b16 %v92
    %v123 = vunpack.c.l.b16 %v93
    %v124 = vunpack.c.h.b16 %v93
    %v125 = vunpack.c.l.b16 %v94
    %v126 = vunpack.c.h.b16 %v94
    %v127 = vunpack.c.l.b16 %v95
    %v128 = vunpack.c.h.b16 %v95
    %v129 = vunpack.c.l.b16 %v96
    %v130 = vunpack.c.h.b16 %v96
    %v131 = vpack.c.b16 %v119, %v115
    %v132 = vpack.c.b16 %v120, %v116
    %v133 = vpack.c.b16 %v121, %v117
    %v134 = vpack.c.b16 %v122, %v118
    %v135 = vpack.c.b16 %v127, %v123
    %v136 = vpack.c.b16 %v128, %v124
    %v137 = vpack.c.b16 %v129, %v125
    %v138 = vpack.c.b16 %v130, %v126
    %vm147 = vcmask 261120
    %v149 = vsel %vm147, %v88, 0
    %151 = vmatpush.bf16.msra.mxu0 0
    %152 = vmatpush.bf16.msra.mxu0 0
    %153 = vmatpush.bf16.msra.mxu0 0
    %154 = vmatpush.bf16.msra.mxu0 0
    %155 = vmatpush.bf16.msra.mxu0 0
    %156 = vmatpush.bf16.msra.mxu0 0
    %157 = vmatpush.bf16.msra.mxu0 %v135
    %158 = vmatpush.bf16.msra.mxu0 %v131
    %159 = vmatmul.bf16.gmra.mxu0 %v149
    %v160 = vpop.f32.mrf.mxu0
    %v161 = vadd.f32 %v99, %v160
    %v162 = vpop.f32.mrf.mxu0
    %163 = vdwg.mxu0
    %164 = vmatpush.bf16.msra.mxu0 0
    %165 = vmatpush.bf16.msra.mxu0 0
    %166 = vmatpush.bf16.msra.mxu0 0
    %167 = vmatpush.bf16.msra.mxu0 0
    %168 = vmatpush.bf16.msra.mxu0 0
    %169 = vmatpush.bf16.msra.mxu0 0
    %170 = vmatpush.bf16.msra.mxu0 %v136
    %171 = vmatpush.bf16.msra.mxu0 %v132
    %172 = vmatmul.bf16.gmra.mxu0 %v149
    %v173 = vpop.f32.mrf.mxu0
    %v174 = vadd.f32 %v100, %v173
    %v175 = vpop.f32.mrf.mxu0
    %176 = vdwg.mxu0
    %177 = vmatpush.bf16.msra.mxu0 0
    %178 = vmatpush.bf16.msra.mxu0 0
    %179 = vmatpush.bf16.msra.mxu0 0
    %180 = vmatpush.bf16.msra.mxu0 0
    %181 = vmatpush.bf16.msra.mxu0 0
    %182 = vmatpush.bf16.msra.mxu0 0
    %183 = vmatpush.bf16.msra.mxu0 %v137
    %184 = vmatpush.bf16.msra.mxu0 %v133
    %185 = vmatmul.bf16.gmra.mxu0 %v149
    %v186 = vpop.f32.mrf.mxu0
    %v187 = vadd.f32 %v101, %v186
    %v188 = vpop.f32.mrf.mxu0
    %189 = vdwg.mxu0
    %190 = vmatpush.bf16.msra.mxu0 0
    %191 = vmatpush.bf16.msra.mxu0 0
    %192 = vmatpush.bf16.msra.mxu0 0
    %193 = vmatpush.bf16.msra.mxu0 0
    %194 = vmatpush.bf16.msra.mxu0 0
    %195 = vmatpush.bf16.msra.mxu0 0
    %196 = vmatpush.bf16.msra.mxu0 %v138
    %197 = vmatpush.bf16.msra.mxu0 %v134
    %198 = vmatmul.bf16.gmra.mxu0 %v149
    %v199 = vpop.f32.mrf.mxu0
    %v200 = vadd.f32 %v102, %v199
    %v201 = vpop.f32.mrf.mxu0
    %202 = vdwg.mxu0
    %v203 = vtanh.pop %v161
    %v204 = vtanh.pop %v174
    %v205 = vtanh.pop %v187
    %v206 = vtanh.pop %v200
    %v207 = vpack.c.bf16 %v203, %v203
    %v208 = vpack.c.bf16 %v204, %v204
    %v209 = vpack.c.bf16 %v205, %v205
    %v210 = vpack.c.bf16 %v206, %v206
    %v211 = vld [vmem:[#allocation2] sm:$0xff]
    %v212 = vld [vmem:[#allocation2 + $0x8] sm:$0xff]
    %v213 = vld [vmem:[#allocation2 + $0x10] sm:$0xff]
    %v214 = vld [vmem:[#allocation2 + $0x18] sm:$0xff]
    %v215 = vld [vmem:[#allocation2 + $0x20] sm:$0xff]
    %v216 = vld [vmem:[#allocation2 + $0x28] sm:$0xff]
    %v217 = vld [vmem:[#allocation2 + $0x30] sm:$0xff]
    %v218 = vld [vmem:[#allocation2 + $0x38] sm:$0xff]
    %v219 = vld [vmem:[#allocation2 + $0x40] sm:$0xff]
    %v220 = vld [vmem:[#allocation2 + $0x48] sm:$0xff]
    %v221 = vld [vmem:[#allocation2 + $0x50] sm:$0xff]
    %v222 = vld [vmem:[#allocation2 + $0x58] sm:$0xff]
    %v223 = vld [vmem:[#allocation2 + $0x60] sm:$0xff]
    %v224 = vld [vmem:[#allocation2 + $0x68] sm:$0xff]
    %v225 = vld [vmem:[#allocation2 + $0x70] sm:$0xff]
    %v226 = vld [vmem:[#allocation2 + $0x78] sm:$0xff]
    %v227 = vld [vmem:[#allocation2 + $0x80] sm:$0xff]
    %v228 = vld [vmem:[#allocation2 + $0x88] sm:$0xff]
    %v229 = vld [vmem:[#allocation2 + $0x90] sm:$0xff]
    %v230 = vld [vmem:[#allocation2 + $0x98] sm:$0xff]
    %v231 = vld [vmem:[#allocation2 + $0xa0] sm:$0xff]
    %v232 = vld [vmem:[#allocation2 + $0xa8] sm:$0xff]
    %v233 = vld [vmem:[#allocation2 + $0xb0] sm:$0xff]
    %v234 = vld [vmem:[#allocation2 + $0xb8] sm:$0xff]
    %v235 = vld [vmem:[#allocation2 + $0xc0] sm:$0xff]
    %v236 = vld [vmem:[#allocation2 + $0xc8] sm:$0xff]
    %v237 = vld [vmem:[#allocation2 + $0xd0] sm:$0xff]
    %v238 = vld [vmem:[#allocation2 + $0xd8] sm:$0xff]
    %v239 = vld [vmem:[#allocation2 + $0xe0] sm:$0xff]
    %v240 = vld [vmem:[#allocation2 + $0xe8] sm:$0xff]
    %v241 = vld [vmem:[#allocation2 + $0xf0] sm:$0xff]
    %v242 = vld [vmem:[#allocation2 + $0xf8] sm:$0xff]
    %v243 = vld [vmem:[#allocation2 + $0x100] sm:$0xff]
    %v244 = vld [vmem:[#allocation2 + $0x108] sm:$0xff]
    %v245 = vld [vmem:[#allocation2 + $0x110] sm:$0xff]
    %v246 = vld [vmem:[#allocation2 + $0x118] sm:$0xff]
    %v247 = vld [vmem:[#allocation2 + $0x120] sm:$0xff]
    %v248 = vld [vmem:[#allocation2 + $0x128] sm:$0xff]
    %v249 = vld [vmem:[#allocation2 + $0x130] sm:$0xff]
    %v250 = vld [vmem:[#allocation2 + $0x138] sm:$0xff]
    %v251 = vld [vmem:[#allocation2 + $0x140] sm:$0xff]
    %v252 = vld [vmem:[#allocation2 + $0x148] sm:$0xff]
    %v253 = vld [vmem:[#allocation2 + $0x150] sm:$0xff]
    %v254 = vld [vmem:[#allocation2 + $0x158] sm:$0xff]
    %v255 = vld [vmem:[#allocation2 + $0x160] sm:$0xff]
    %v256 = vld [vmem:[#allocation2 + $0x168] sm:$0xff]
    %v257 = vld [vmem:[#allocation2 + $0x170] sm:$0xff]
    %v258 = vld [vmem:[#allocation2 + $0x178] sm:$0xff]
    %v259 = vld [vmem:[#allocation2 + $0x180] sm:$0xff]
    %v260 = vld [vmem:[#allocation2 + $0x188] sm:$0xff]
    %v261 = vld [vmem:[#allocation2 + $0x190] sm:$0xff]
    %v262 = vld [vmem:[#allocation2 + $0x198] sm:$0xff]
    %v263 = vld [vmem:[#allocation2 + $0x1a0] sm:$0xff]
    %v264 = vld [vmem:[#allocation2 + $0x1a8] sm:$0xff]
    %v265 = vld [vmem:[#allocation2 + $0x1b0] sm:$0xff]
    %v266 = vld [vmem:[#allocation2 + $0x1b8] sm:$0xff]
    %v267 = vld [vmem:[#allocation2 + $0x1c0] sm:$0xff]
    %v268 = vld [vmem:[#allocation2 + $0x1c8] sm:$0xff]
    %v269 = vld [vmem:[#allocation2 + $0x1d0] sm:$0xff]
    %v270 = vld [vmem:[#allocation2 + $0x1d8] sm:$0xff]
    %v271 = vld [vmem:[#allocation2 + $0x1e0] sm:$0xff]
    %v272 = vld [vmem:[#allocation2 + $0x1e8] sm:$0xff]
    %v273 = vld [vmem:[#allocation2 + $0x1f0] sm:$0xff]
    %v274 = vld [vmem:[#allocation2 + $0x1f8] sm:$0xff]
    %v275 = vld [vmem:[%s4] sm:$0x3]
    %v277 = vperm.slane %v275, 0
    %v278 = vperm.slane %v275, 1
    %v345 = vunpack.c.l.b16 %v211
    %v346 = vunpack.c.h.b16 %v211
    %v347 = vunpack.c.l.b16 %v212
    %v348 = vunpack.c.h.b16 %v212
    %v349 = vunpack.c.l.b16 %v213
    %v350 = vunpack.c.h.b16 %v213
    %v351 = vunpack.c.l.b16 %v214
    %v352 = vunpack.c.h.b16 %v214
    %v353 = vunpack.c.l.b16 %v215
    %v354 = vunpack.c.h.b16 %v215
    %v355 = vunpack.c.l.b16 %v216
    %v356 = vunpack.c.h.b16 %v216
    %v357 = vunpack.c.l.b16 %v217
    %v358 = vunpack.c.h.b16 %v217
    %v359 = vunpack.c.l.b16 %v218
    %v360 = vunpack.c.h.b16 %v218
    %v361 = vunpack.c.l.b16 %v219
    %v362 = vunpack.c.h.b16 %v219
    %v363 = vunpack.c.l.b16 %v220
    %v364 = vunpack.c.h.b16 %v220
    %v365 = vunpack.c.l.b16 %v221
    %v366 = vunpack.c.h.b16 %v221
    %v367 = vunpack.c.l.b16 %v222
    %v368 = vunpack.c.h.b16 %v222
    %v369 = vunpack.c.l.b16 %v223
    %v370 = vunpack.c.h.b16 %v223
    %v371 = vunpack.c.l.b16 %v224
    %v372 = vunpack.c.h.b16 %v224
    %v373 = vunpack.c.l.b16 %v225
    %v374 = vunpack.c.h.b16 %v225
    %v375 = vunpack.c.l.b16 %v226
    %v376 = vunpack.c.h.b16 %v226
    %v377 = vunpack.c.l.b16 %v227
    %v378 = vunpack.c.h.b16 %v227
    %v379 = vunpack.c.l.b16 %v228
    %v380 = vunpack.c.h.b16 %v228
    %v381 = vunpack.c.l.b16 %v229
    %v382 = vunpack.c.h.b16 %v229
    %v383 = vunpack.c.l.b16 %v230
    %v384 = vunpack.c.h.b16 %v230
    %v385 = vunpack.c.l.b16 %v231
    %v386 = vunpack.c.h.b16 %v231
    %v387 = vunpack.c.l.b16 %v232
    %v388 = vunpack.c.h.b16 %v232
    %v389 = vunpack.c.l.b16 %v233
    %v390 = vunpack.c.h.b16 %v233
    %v391 = vunpack.c.l.b16 %v234
    %v392 = vunpack.c.h.b16 %v234
    %v393 = vunpack.c.l.b16 %v235
    %v394 = vunpack.c.h.b16 %v235
    %v395 = vunpack.c.l.b16 %v236
    %v396 = vunpack.c.h.b16 %v236
    %v397 = vunpack.c.l.b16 %v237
    %v398 = vunpack.c.h.b16 %v237
    %v399 = vunpack.c.l.b16 %v238
    %v400 = vunpack.c.h.b16 %v238
    %v401 = vunpack.c.l.b16 %v239
    %v402 = vunpack.c.h.b16 %v239
    %v403 = vunpack.c.l.b16 %v240
    %v404 = vunpack.c.h.b16 %v240
    %v405 = vunpack.c.l.b16 %v241
    %v406 = vunpack.c.h.b16 %v241
    %v407 = vunpack.c.l.b16 %v242
    %v408 = vunpack.c.h.b16 %v242
    %v409 = vunpack.c.l.b16 %v243
    %v410 = vunpack.c.h.b16 %v243
    %v411 = vunpack.c.l.b16 %v244
    %v412 = vunpack.c.h.b16 %v244
    %v413 = vunpack.c.l.b16 %v245
    %v414 = vunpack.c.h.b16 %v245
    %v415 = vunpack.c.l.b16 %v246
    %v416 = vunpack.c.h.b16 %v246
    %v417 = vunpack.c.l.b16 %v247
    %v418 = vunpack.c.h.b16 %v247
    %v419 = vunpack.c.l.b16 %v248
    %v420 = vunpack.c.h.b16 %v248
    %v421 = vunpack.c.l.b16 %v249
    %v422 = vunpack.c.h.b16 %v249
    %v423 = vunpack.c.l.b16 %v250
    %v424 = vunpack.c.h.b16 %v250
    %v425 = vunpack.c.l.b16 %v251
    %v426 = vunpack.c.h.b16 %v251
    %v427 = vunpack.c.l.b16 %v252
    %v428 = vunpack.c.h.b16 %v252
    %v429 = vunpack.c.l.b16 %v253
    %v430 = vunpack.c.h.b16 %v253
    %v431 = vunpack.c.l.b16 %v254
    %v432 = vunpack.c.h.b16 %v254
    %v433 = vunpack.c.l.b16 %v255
    %v434 = vunpack.c.h.b16 %v255
    %v435 = vunpack.c.l.b16 %v256
    %v436 = vunpack.c.h.b16 %v256
    %v437 = vunpack.c.l.b16 %v257
    %v438 = vunpack.c.h.b16 %v257
    %v439 = vunpack.c.l.b16 %v258
    %v440 = vunpack.c.h.b16 %v258
    %v441 = vunpack.c.l.b16 %v259
    %v442 = vunpack.c.h.b16 %v259
    %v443 = vunpack.c.l.b16 %v260
    %v444 = vunpack.c.h.b16 %v260
    %v445 = vunpack.c.l.b16 %v261
    %v446 = vunpack.c.h.b16 %v261
    %v447 = vunpack.c.l.b16 %v262
    %v448 = vunpack.c.h.b16 %v262
    %v449 = vunpack.c.l.b16 %v263
    %v450 = vunpack.c.h.b16 %v263
    %v451 = vunpack.c.l.b16 %v264
    %v452 = vunpack.c.h.b16 %v264
    %v453 = vunpack.c.l.b16 %v265
    %v454 = vunpack.c.h.b16 %v265
    %v455 = vunpack.c.l.b16 %v266
    %v456 = vunpack.c.h.b16 %v266
    %v457 = vunpack.c.l.b16 %v267
    %v458 = vunpack.c.h.b16 %v267
    %v459 = vunpack.c.l.b16 %v268
    %v460 = vunpack.c.h.b16 %v268
    %v461 = vunpack.c.l.b16 %v269
    %v462 = vunpack.c.h.b16 %v269
    %v463 = vunpack.c.l.b16 %v270
    %v464 = vunpack.c.h.b16 %v270
    %v465 = vunpack.c.l.b16 %v271
    %v466 = vunpack.c.h.b16 %v271
    %v467 = vunpack.c.l.b16 %v272
    %v468 = vunpack.c.h.b16 %v272
    %v469 = vunpack.c.l.b16 %v273
    %v470 = vunpack.c.h.b16 %v273
    %v471 = vunpack.c.l.b16 %v274
    %v472 = vunpack.c.h.b16 %v274
    %v473 = vpack.c.b16 %v347, %v345
    %v474 = vpack.c.b16 %v348, %v346
    %v475 = vpack.c.b16 %v351, %v349
    %v476 = vpack.c.b16 %v352, %v350
    %v477 = vpack.c.b16 %v355, %v353
    %v478 = vpack.c.b16 %v356, %v354
    %v479 = vpack.c.b16 %v359, %v357
    %v480 = vpack.c.b16 %v360, %v358
    %v481 = vpack.c.b16 %v363, %v361
    %v482 = vpack.c.b16 %v364, %v362
    %v483 = vpack.c.b16 %v367, %v365
    %v484 = vpack.c.b16 %v368, %v366
    %v485 = vpack.c.b16 %v371, %v369
    %v486 = vpack.c.b16 %v372, %v370
    %v487 = vpack.c.b16 %v375, %v373
    %v488 = vpack.c.b16 %v376, %v374
    %v489 = vpack.c.b16 %v379, %v377
    %v490 = vpack.c.b16 %v380, %v378
    %v491 = vpack.c.b16 %v383, %v381
    %v492 = vpack.c.b16 %v384, %v382
    %v493 = vpack.c.b16 %v387, %v385
    %v494 = vpack.c.b16 %v388, %v386
    %v495 = vpack.c.b16 %v391, %v389
    %v496 = vpack.c.b16 %v392, %v390
    %v497 = vpack.c.b16 %v395, %v393
    %v498 = vpack.c.b16 %v396, %v394
    %v499 = vpack.c.b16 %v399, %v397
    %v500 = vpack.c.b16 %v400, %v398
    %v501 = vpack.c.b16 %v403, %v401
    %v502 = vpack.c.b16 %v404, %v402
    %v503 = vpack.c.b16 %v407, %v405
    %v504 = vpack.c.b16 %v408, %v406
    %v505 = vpack.c.b16 %v411, %v409
    %v506 = vpack.c.b16 %v412, %v410
    %v507 = vpack.c.b16 %v415, %v413
    %v508 = vpack.c.b16 %v416, %v414
    %v509 = vpack.c.b16 %v419, %v417
    %v510 = vpack.c.b16 %v420, %v418
    %v511 = vpack.c.b16 %v423, %v421
    %v512 = vpack.c.b16 %v424, %v422
    %v513 = vpack.c.b16 %v427, %v425
    %v514 = vpack.c.b16 %v428, %v426
    %v515 = vpack.c.b16 %v431, %v429
    %v516 = vpack.c.b16 %v432, %v430
    %v517 = vpack.c.b16 %v435, %v433
    %v518 = vpack.c.b16 %v436, %v434
    %v519 = vpack.c.b16 %v439, %v437
    %v520 = vpack.c.b16 %v440, %v438
    %v521 = vpack.c.b16 %v443, %v441
    %v522 = vpack.c.b16 %v444, %v442
    %v523 = vpack.c.b16 %v447, %v445
    %v524 = vpack.c.b16 %v448, %v446
    %v525 = vpack.c.b16 %v451, %v449
    %v526 = vpack.c.b16 %v452, %v450
    %v527 = vpack.c.b16 %v455, %v453
    %v528 = vpack.c.b16 %v456, %v454
    %v529 = vpack.c.b16 %v459, %v457
    %v530 = vpack.c.b16 %v460, %v458
    %v531 = vpack.c.b16 %v463, %v461
    %v532 = vpack.c.b16 %v464, %v462
    %v533 = vpack.c.b16 %v467, %v465
    %v534 = vpack.c.b16 %v468, %v466
    %v535 = vpack.c.b16 %v471, %v469
    %v536 = vpack.c.b16 %v472, %v470
    %601 = vmatpush.bf16.msra.mxu0 %v487
    %602 = vmatpush.bf16.msra.mxu0 %v485
    %603 = vmatpush.bf16.msra.mxu0 %v483
    %604 = vmatpush.bf16.msra.mxu0 %v481
    %605 = vmatpush.bf16.msra.mxu0 %v479
    %606 = vmatpush.bf16.msra.mxu0 %v477
    %607 = vmatpush.bf16.msra.mxu0 %v475
    %608 = vmatpush.bf16.msra.mxu0 %v473
    %609 = vmatmul.bf16.gmra.mxu0 %v207
    %v610 = vpop.f32.mrf.mxu0
    %v611 = vadd.f32 %v277, %v610
    %v612 = vpop.f32.mrf.mxu0
    %613 = vdwg.mxu0
    %614 = vmatpush.bf16.msra.mxu0 %v503
    %615 = vmatpush.bf16.msra.mxu0 %v501
    %616 = vmatpush.bf16.msra.mxu0 %v499
    %617 = vmatpush.bf16.msra.mxu0 %v497
    %618 = vmatpush.bf16.msra.mxu0 %v495
    %619 = vmatpush.bf16.msra.mxu0 %v493
    %620 = vmatpush.bf16.msra.mxu0 %v491
    %621 = vmatpush.bf16.msra.mxu0 %v489
    %622 = vmatmul.bf16.gmra.mxu0 %v208
    %v623 = vpop.f32.mrf.mxu0
    %v624 = vadd.f32 %v611, %v623
    %v625 = vpop.f32.mrf.mxu0
    %626 = vdwg.mxu0
    %627 = vmatpush.bf16.msra.mxu0 %v519
    %628 = vmatpush.bf16.msra.mxu0 %v517
    %629 = vmatpush.bf16.msra.mxu0 %v515
    %630 = vmatpush.bf16.msra.mxu0 %v513
    %631 = vmatpush.bf16.msra.mxu0 %v511
    %632 = vmatpush.bf16.msra.mxu0 %v509
    %633 = vmatpush.bf16.msra.mxu0 %v507
    %634 = vmatpush.bf16.msra.mxu0 %v505
    %635 = vmatmul.bf16.gmra.mxu0 %v209
    %v636 = vpop.f32.mrf.mxu0
    %v637 = vadd.f32 %v624, %v636
    %v638 = vpop.f32.mrf.mxu0
    %639 = vdwg.mxu0
    %640 = vmatpush.bf16.msra.mxu0 %v535
    %641 = vmatpush.bf16.msra.mxu0 %v533
    %642 = vmatpush.bf16.msra.mxu0 %v531
    %643 = vmatpush.bf16.msra.mxu0 %v529
    %644 = vmatpush.bf16.msra.mxu0 %v527
    %645 = vmatpush.bf16.msra.mxu0 %v525
    %646 = vmatpush.bf16.msra.mxu0 %v523
    %647 = vmatpush.bf16.msra.mxu0 %v521
    %648 = vmatmul.bf16.gmra.mxu0 %v210
    %v649 = vpop.f32.mrf.mxu0
    %v650 = vadd.f32 %v637, %v649
    %v651 = vpop.f32.mrf.mxu0
    %652 = vdwg.mxu0
    %653 = vmatpush.bf16.msra.mxu0 %v488
    %654 = vmatpush.bf16.msra.mxu0 %v486
    %655 = vmatpush.bf16.msra.mxu0 %v484
    %656 = vmatpush.bf16.msra.mxu0 %v482
    %657 = vmatpush.bf16.msra.mxu0 %v480
    %658 = vmatpush.bf16.msra.mxu0 %v478
    %659 = vmatpush.bf16.msra.mxu0 %v476
    %660 = vmatpush.bf16.msra.mxu0 %v474
    %661 = vmatmul.bf16.gmra.mxu0 %v207
    %v662 = vpop.f32.mrf.mxu0
    %v663 = vadd.f32 %v278, %v662
    %v664 = vpop.f32.mrf.mxu0
    %665 = vdwg.mxu0
    %666 = vmatpush.bf16.msra.mxu0 %v504
    %667 = vmatpush.bf16.msra.mxu0 %v502
    %668 = vmatpush.bf16.msra.mxu0 %v500
    %669 = vmatpush.bf16.msra.mxu0 %v498
    %670 = vmatpush.bf16.msra.mxu0 %v496
    %671 = vmatpush.bf16.msra.mxu0 %v494
    %672 = vmatpush.bf16.msra.mxu0 %v492
    %673 = vmatpush.bf16.msra.mxu0 %v490
    %674 = vmatmul.bf16.gmra.mxu0 %v208
    %v675 = vpop.f32.mrf.mxu0
    %v676 = vadd.f32 %v663, %v675
    %v677 = vpop.f32.mrf.mxu0
    %678 = vdwg.mxu0
    %679 = vmatpush.bf16.msra.mxu0 %v520
    %680 = vmatpush.bf16.msra.mxu0 %v518
    %681 = vmatpush.bf16.msra.mxu0 %v516
    %682 = vmatpush.bf16.msra.mxu0 %v514
    %683 = vmatpush.bf16.msra.mxu0 %v512
    %684 = vmatpush.bf16.msra.mxu0 %v510
    %685 = vmatpush.bf16.msra.mxu0 %v508
    %686 = vmatpush.bf16.msra.mxu0 %v506
    %687 = vmatmul.bf16.gmra.mxu0 %v209
    %v688 = vpop.f32.mrf.mxu0
    %v689 = vadd.f32 %v676, %v688
    %v690 = vpop.f32.mrf.mxu0
    %691 = vdwg.mxu0
    %692 = vmatpush.bf16.msra.mxu0 %v536
    %693 = vmatpush.bf16.msra.mxu0 %v534
    %694 = vmatpush.bf16.msra.mxu0 %v532
    %695 = vmatpush.bf16.msra.mxu0 %v530
    %696 = vmatpush.bf16.msra.mxu0 %v528
    %697 = vmatpush.bf16.msra.mxu0 %v526
    %698 = vmatpush.bf16.msra.mxu0 %v524
    %699 = vmatpush.bf16.msra.mxu0 %v522
    %700 = vmatmul.bf16.gmra.mxu0 %v210
    %v701 = vpop.f32.mrf.mxu0
    %v702 = vadd.f32 %v689, %v701
    %v703 = vpop.f32.mrf.mxu0
    %704 = vdwg.mxu0
    %v705 = vtanh.pop %v650
    %v706 = vtanh.pop %v702
    %v707 = vpack.c.bf16 %v705, %v705
    %v708 = vpack.c.bf16 %v706, %v706
    %v709 = vld [vmem:[#allocation5] sm:$0xff]
    %v710 = vld [vmem:[#allocation5 + $0x8] sm:$0xff]
    %v711 = vld [vmem:[#allocation5 + $0x10] sm:$0xff]
    %v712 = vld [vmem:[#allocation5 + $0x18] sm:$0xff]
    %v713 = vld [vmem:[#allocation5 + $0x20] sm:$0xff]
    %v714 = vld [vmem:[#allocation5 + $0x28] sm:$0xff]
    %v715 = vld [vmem:[#allocation5 + $0x30] sm:$0xff]
    %v716 = vld [vmem:[#allocation5 + $0x38] sm:$0xff]
    %v717 = vld [vmem:[#allocation5 + $0x40] sm:$0xff]
    %v718 = vld [vmem:[#allocation5 + $0x48] sm:$0xff]
    %v719 = vld [vmem:[#allocation5 + $0x50] sm:$0xff]
    %v720 = vld [vmem:[#allocation5 + $0x58] sm:$0xff]
    %v721 = vld [vmem:[#allocation5 + $0x60] sm:$0xff]
    %v722 = vld [vmem:[#allocation5 + $0x68] sm:$0xff]
    %v723 = vld [vmem:[#allocation5 + $0x70] sm:$0xff]
    %v724 = vld [vmem:[#allocation5 + $0x78] sm:$0xff]
    %v725 = vld [vmem:[#allocation5 + $0x80] sm:$0xff]
    %v726 = vld [vmem:[#allocation5 + $0x88] sm:$0xff]
    %v727 = vld [vmem:[#allocation5 + $0x90] sm:$0xff]
    %v728 = vld [vmem:[#allocation5 + $0x98] sm:$0xff]
    %v729 = vld [vmem:[#allocation5 + $0xa0] sm:$0xff]
    %v730 = vld [vmem:[#allocation5 + $0xa8] sm:$0xff]
    %v731 = vld [vmem:[#allocation5 + $0xb0] sm:$0xff]
    %v732 = vld [vmem:[#allocation5 + $0xb8] sm:$0xff]
    %v733 = vld [vmem:[#allocation5 + $0xc0] sm:$0xff]
    %v734 = vld [vmem:[#allocation5 + $0xc8] sm:$0xff]
    %v735 = vld [vmem:[#allocation5 + $0xd0] sm:$0xff]
    %v736 = vld [vmem:[#allocation5 + $0xd8] sm:$0xff]
    %v737 = vld [vmem:[#allocation5 + $0xe0] sm:$0xff]
    %v738 = vld [vmem:[#allocation5 + $0xe8] sm:$0xff]
    %v739 = vld [vmem:[#allocation5 + $0xf0] sm:$0xff]
    %v740 = vld [vmem:[#allocation5 + $0xf8] sm:$0xff]
    %v741 = vld [vmem:[%s6] sm:$0x3]
    %v743 = vperm.slane %v741, 0
    %v744 = vperm.slane %v741, 1
    %v779 = vunpack.c.l.b16 %v709
    %v780 = vunpack.c.h.b16 %v709
    %v781 = vunpack.c.l.b16 %v710
    %v782 = vunpack.c.h.b16 %v710
    %v783 = vunpack.c.l.b16 %v711
    %v784 = vunpack.c.h.b16 %v711
    %v785 = vunpack.c.l.b16 %v712
    %v786 = vunpack.c.h.b16 %v712
    %v787 = vunpack.c.l.b16 %v713
    %v788 = vunpack.c.h.b16 %v713
    %v789 = vunpack.c.l.b16 %v714
    %v790 = vunpack.c.h.b16 %v714
    %v791 = vunpack.c.l.b16 %v715
    %v792 = vunpack.c.h.b16 %v715
    %v793 = vunpack.c.l.b16 %v716
    %v794 = vunpack.c.h.b16 %v716
    %v795 = vunpack.c.l.b16 %v717
    %v796 = vunpack.c.h.b16 %v717
    %v797 = vunpack.c.l.b16 %v718
    %v798 = vunpack.c.h.b16 %v718
    %v799 = vunpack.c.l.b16 %v719
    %v800 = vunpack.c.h.b16 %v719
    %v801 = vunpack.c.l.b16 %v720
    %v802 = vunpack.c.h.b16 %v720
    %v803 = vunpack.c.l.b16 %v721
    %v804 = vunpack.c.h.b16 %v721
    %v805 = vunpack.c.l.b16 %v722
    %v806 = vunpack.c.h.b16 %v722
    %v807 = vunpack.c.l.b16 %v723
    %v808 = vunpack.c.h.b16 %v723
    %v809 = vunpack.c.l.b16 %v724
    %v810 = vunpack.c.h.b16 %v724
    %v811 = vunpack.c.l.b16 %v725
    %v812 = vunpack.c.h.b16 %v725
    %v813 = vunpack.c.l.b16 %v726
    %v814 = vunpack.c.h.b16 %v726
    %v815 = vunpack.c.l.b16 %v727
    %v816 = vunpack.c.h.b16 %v727
    %v817 = vunpack.c.l.b16 %v728
    %v818 = vunpack.c.h.b16 %v728
    %v819 = vunpack.c.l.b16 %v729
    %v820 = vunpack.c.h.b16 %v729
    %v821 = vunpack.c.l.b16 %v730
    %v822 = vunpack.c.h.b16 %v730
    %v823 = vunpack.c.l.b16 %v731
    %v824 = vunpack.c.h.b16 %v731
    %v825 = vunpack.c.l.b16 %v732
    %v826 = vunpack.c.h.b16 %v732
    %v827 = vunpack.c.l.b16 %v733
    %v828 = vunpack.c.h.b16 %v733
    %v829 = vunpack.c.l.b16 %v734
    %v830 = vunpack.c.h.b16 %v734
    %v831 = vunpack.c.l.b16 %v735
    %v832 = vunpack.c.h.b16 %v735
    %v833 = vunpack.c.l.b16 %v736
    %v834 = vunpack.c.h.b16 %v736
    %v835 = vunpack.c.l.b16 %v737
    %v836 = vunpack.c.h.b16 %v737
    %v837 = vunpack.c.l.b16 %v738
    %v838 = vunpack.c.h.b16 %v738
    %v839 = vunpack.c.l.b16 %v739
    %v840 = vunpack.c.h.b16 %v739
    %v841 = vunpack.c.l.b16 %v740
    %v842 = vunpack.c.h.b16 %v740
    %v843 = vpack.c.b16 %v781, %v779
    %v844 = vpack.c.b16 %v782, %v780
    %v845 = vpack.c.b16 %v785, %v783
    %v846 = vpack.c.b16 %v786, %v784
    %v847 = vpack.c.b16 %v789, %v787
    %v848 = vpack.c.b16 %v790, %v788
    %v849 = vpack.c.b16 %v793, %v791
    %v850 = vpack.c.b16 %v794, %v792
    %v851 = vpack.c.b16 %v797, %v795
    %v852 = vpack.c.b16 %v798, %v796
    %v853 = vpack.c.b16 %v801, %v799
    %v854 = vpack.c.b16 %v802, %v800
    %v855 = vpack.c.b16 %v805, %v803
    %v856 = vpack.c.b16 %v806, %v804
    %v857 = vpack.c.b16 %v809, %v807
    %v858 = vpack.c.b16 %v810, %v808
    %v859 = vpack.c.b16 %v813, %v811
    %v860 = vpack.c.b16 %v814, %v812
    %v861 = vpack.c.b16 %v817, %v815
    %v862 = vpack.c.b16 %v818, %v816
    %v863 = vpack.c.b16 %v821, %v819
    %v864 = vpack.c.b16 %v822, %v820
    %v865 = vpack.c.b16 %v825, %v823
    %v866 = vpack.c.b16 %v826, %v824
    %v867 = vpack.c.b16 %v829, %v827
    %v868 = vpack.c.b16 %v830, %v828
    %v869 = vpack.c.b16 %v833, %v831
    %v870 = vpack.c.b16 %v834, %v832
    %v871 = vpack.c.b16 %v837, %v835
    %v872 = vpack.c.b16 %v838, %v836
    %v873 = vpack.c.b16 %v841, %v839
    %v874 = vpack.c.b16 %v842, %v840
    %907 = vmatpush.bf16.msra.mxu0 %v857
    %908 = vmatpush.bf16.msra.mxu0 %v855
    %909 = vmatpush.bf16.msra.mxu0 %v853
    %910 = vmatpush.bf16.msra.mxu0 %v851
    %911 = vmatpush.bf16.msra.mxu0 %v849
    %912 = vmatpush.bf16.msra.mxu0 %v847
    %913 = vmatpush.bf16.msra.mxu0 %v845
    %914 = vmatpush.bf16.msra.mxu0 %v843
    %915 = vmatmul.bf16.gmra.mxu0 %v707
    %v916 = vpop.f32.mrf.mxu0
    %v917 = vadd.f32 %v743, %v916
    %v918 = vpop.f32.mrf.mxu0
    %919 = vdwg.mxu0
    %920 = vmatpush.bf16.msra.mxu0 %v873
    %921 = vmatpush.bf16.msra.mxu0 %v871
    %922 = vmatpush.bf16.msra.mxu0 %v869
    %923 = vmatpush.bf16.msra.mxu0 %v867
    %924 = vmatpush.bf16.msra.mxu0 %v865
    %925 = vmatpush.bf16.msra.mxu0 %v863
    %926 = vmatpush.bf16.msra.mxu0 %v861
    %927 = vmatpush.bf16.msra.mxu0 %v859
    %928 = vmatmul.bf16.gmra.mxu0 %v708
    %v929 = vpop.f32.mrf.mxu0
    %v930 = vadd.f32 %v917, %v929
    %v931 = vpop.f32.mrf.mxu0
    %932 = vdwg.mxu0
    %933 = vmatpush.bf16.msra.mxu0 %v858
    %934 = vmatpush.bf16.msra.mxu0 %v856
    %935 = vmatpush.bf16.msra.mxu0 %v854
    %936 = vmatpush.bf16.msra.mxu0 %v852
    %937 = vmatpush.bf16.msra.mxu0 %v850
    %938 = vmatpush.bf16.msra.mxu0 %v848
    %939 = vmatpush.bf16.msra.mxu0 %v846
    %940 = vmatpush.bf16.msra.mxu0 %v844
    %941 = vmatmul.bf16.gmra.mxu0 %v707
    %v942 = vpop.f32.mrf.mxu0
    %v943 = vadd.f32 %v744, %v942
    %v944 = vpop.f32.mrf.mxu0
    %945 = vdwg.mxu0
    %946 = vmatpush.bf16.msra.mxu0 %v874
    %947 = vmatpush.bf16.msra.mxu0 %v872
    %948 = vmatpush.bf16.msra.mxu0 %v870
    %949 = vmatpush.bf16.msra.mxu0 %v868
    %950 = vmatpush.bf16.msra.mxu0 %v866
    %951 = vmatpush.bf16.msra.mxu0 %v864
    %952 = vmatpush.bf16.msra.mxu0 %v862
    %953 = vmatpush.bf16.msra.mxu0 %v860
    %954 = vmatmul.bf16.gmra.mxu0 %v708
    %v955 = vpop.f32.mrf.mxu0
    %v956 = vadd.f32 %v943, %v955
    %v957 = vpop.f32.mrf.mxu0
    %958 = vdwg.mxu0
    %v959 = vtanh.pop %v930
    %v960 = vtanh.pop %v956
    %v961 = vpack.c.bf16 %v959, %v959
    %v962 = vpack.c.bf16 %v960, %v960
    %v963 = vld [vmem:[#allocation7] sm:$0xff]
    %v964 = vld [vmem:[#allocation7 + $0x8] sm:$0xff]
    %v965 = vld [vmem:[#allocation7 + $0x10] sm:$0xff]
    %v966 = vld [vmem:[#allocation7 + $0x18] sm:$0xff]
    %v967 = vld [vmem:[#allocation7 + $0x20] sm:$0xff]
    %v968 = vld [vmem:[#allocation7 + $0x28] sm:$0xff]
    %v969 = vld [vmem:[#allocation7 + $0x30] sm:$0xff]
    %v970 = vld [vmem:[#allocation7 + $0x38] sm:$0xff]
    %v971 = vld [vmem:[#allocation7 + $0x40] sm:$0xff]
    %v972 = vld [vmem:[#allocation7 + $0x48] sm:$0xff]
    %v973 = vld [vmem:[#allocation7 + $0x50] sm:$0xff]
    %v974 = vld [vmem:[#allocation7 + $0x58] sm:$0xff]
    %v975 = vld [vmem:[#allocation7 + $0x60] sm:$0xff]
    %v976 = vld [vmem:[#allocation7 + $0x68] sm:$0xff]
    %v977 = vld [vmem:[#allocation7 + $0x70] sm:$0xff]
    %v978 = vld [vmem:[#allocation7 + $0x78] sm:$0xff]
    %v979 = vld [vmem:[#allocation7 + $0x80] sm:$0xff]
    %v980 = vld [vmem:[#allocation7 + $0x88] sm:$0xff]
    %v981 = vld [vmem:[#allocation7 + $0x90] sm:$0xff]
    %v982 = vld [vmem:[#allocation7 + $0x98] sm:$0xff]
    %v983 = vld [vmem:[#allocation7 + $0xa0] sm:$0xff]
    %v984 = vld [vmem:[#allocation7 + $0xa8] sm:$0xff]
    %v985 = vld [vmem:[#allocation7 + $0xb0] sm:$0xff]
    %v986 = vld [vmem:[#allocation7 + $0xb8] sm:$0xff]
    %v987 = vld [vmem:[#allocation7 + $0xc0] sm:$0xff]
    %v988 = vld [vmem:[#allocation7 + $0xc8] sm:$0xff]
    %v989 = vld [vmem:[#allocation7 + $0xd0] sm:$0xff]
    %v990 = vld [vmem:[#allocation7 + $0xd8] sm:$0xff]
    %v991 = vld [vmem:[#allocation7 + $0xe0] sm:$0xff]
    %v992 = vld [vmem:[#allocation7 + $0xe8] sm:$0xff]
    %v993 = vld [vmem:[#allocation7 + $0xf0] sm:$0xff]
    %v994 = vld [vmem:[#allocation7 + $0xf8] sm:$0xff]
    %v995 = vld [vmem:[%s8] sm:$0x3]
    %v997 = vperm.slane %v995, 0
    %v998 = vperm.slane %v995, 1
    %v1033 = vunpack.c.l.b16 %v963
    %v1034 = vunpack.c.h.b16 %v963
    %v1035 = vunpack.c.l.b16 %v964
    %v1036 = vunpack.c.h.b16 %v964
    %v1037 = vunpack.c.l.b16 %v965
    %v1038 = vunpack.c.h.b16 %v965
    %v1039 = vunpack.c.l.b16 %v966
    %v1040 = vunpack.c.h.b16 %v966
    %v1041 = vunpack.c.l.b16 %v967
    %v1042 = vunpack.c.h.b16 %v967
    %v1043 = vunpack.c.l.b16 %v968
    %v1044 = vunpack.c.h.b16 %v968
    %v1045 = vunpack.c.l.b16 %v969
    %v1046 = vunpack.c.h.b16 %v969
    %v1047 = vunpack.c.l.b16 %v970
    %v1048 = vunpack.c.h.b16 %v970
    %v1049 = vunpack.c.l.b16 %v971
    %v1050 = vunpack.c.h.b16 %v971
    %v1051 = vunpack.c.l.b16 %v972
    %v1052 = vunpack.c.h.b16 %v972
    %v1053 = vunpack.c.l.b16 %v973
    %v1054 = vunpack.c.h.b16 %v973
    %v1055 = vunpack.c.l.b16 %v974
    %v1056 = vunpack.c.h.b16 %v974
    %v1057 = vunpack.c.l.b16 %v975
    %v1058 = vunpack.c.h.b16 %v975
    %v1059 = vunpack.c.l.b16 %v976
    %v1060 = vunpack.c.h.b16 %v976
    %v1061 = vunpack.c.l.b16 %v977
    %v1062 = vunpack.c.h.b16 %v977
    %v1063 = vunpack.c.l.b16 %v978
    %v1064 = vunpack.c.h.b16 %v978
    %v1065 = vunpack.c.l.b16 %v979
    %v1066 = vunpack.c.h.b16 %v979
    %v1067 = vunpack.c.l.b16 %v980
    %v1068 = vunpack.c.h.b16 %v980
    %v1069 = vunpack.c.l.b16 %v981
    %v1070 = vunpack.c.h.b16 %v981
    %v1071 = vunpack.c.l.b16 %v982
    %v1072 = vunpack.c.h.b16 %v982
    %v1073 = vunpack.c.l.b16 %v983
    %v1074 = vunpack.c.h.b16 %v983
    %v1075 = vunpack.c.l.b16 %v984
    %v1076 = vunpack.c.h.b16 %v984
    %v1077 = vunpack.c.l.b16 %v985
    %v1078 = vunpack.c.h.b16 %v985
    %v1079 = vunpack.c.l.b16 %v986
    %v1080 = vunpack.c.h.b16 %v986
    %v1081 = vunpack.c.l.b16 %v987
    %v1082 = vunpack.c.h.b16 %v987
    %v1083 = vunpack.c.l.b16 %v988
    %v1084 = vunpack.c.h.b16 %v988
    %v1085 = vunpack.c.l.b16 %v989
    %v1086 = vunpack.c.h.b16 %v989
    %v1087 = vunpack.c.l.b16 %v990
    %v1088 = vunpack.c.h.b16 %v990
    %v1089 = vunpack.c.l.b16 %v991
    %v1090 = vunpack.c.h.b16 %v991
    %v1091 = vunpack.c.l.b16 %v992
    %v1092 = vunpack.c.h.b16 %v992
    %v1093 = vunpack.c.l.b16 %v993
    %v1094 = vunpack.c.h.b16 %v993
    %v1095 = vunpack.c.l.b16 %v994
    %v1096 = vunpack.c.h.b16 %v994
    %v1097 = vpack.c.b16 %v1035, %v1033
    %v1098 = vpack.c.b16 %v1036, %v1034
    %v1099 = vpack.c.b16 %v1039, %v1037
    %v1100 = vpack.c.b16 %v1040, %v1038
    %v1101 = vpack.c.b16 %v1043, %v1041
    %v1102 = vpack.c.b16 %v1044, %v1042
    %v1103 = vpack.c.b16 %v1047, %v1045
    %v1104 = vpack.c.b16 %v1048, %v1046
    %v1105 = vpack.c.b16 %v1051, %v1049
    %v1106 = vpack.c.b16 %v1052, %v1050
    %v1107 = vpack.c.b16 %v1055, %v1053
    %v1108 = vpack.c.b16 %v1056, %v1054
    %v1109 = vpack.c.b16 %v1059, %v1057
    %v1110 = vpack.c.b16 %v1060, %v1058
    %v1111 = vpack.c.b16 %v1063, %v1061
    %v1112 = vpack.c.b16 %v1064, %v1062
    %v1113 = vpack.c.b16 %v1067, %v1065
    %v1114 = vpack.c.b16 %v1068, %v1066
    %v1115 = vpack.c.b16 %v1071, %v1069
    %v1116 = vpack.c.b16 %v1072, %v1070
    %v1117 = vpack.c.b16 %v1075, %v1073
    %v1118 = vpack.c.b16 %v1076, %v1074
    %v1119 = vpack.c.b16 %v1079, %v1077
    %v1120 = vpack.c.b16 %v1080, %v1078
    %v1121 = vpack.c.b16 %v1083, %v1081
    %v1122 = vpack.c.b16 %v1084, %v1082
    %v1123 = vpack.c.b16 %v1087, %v1085
    %v1124 = vpack.c.b16 %v1088, %v1086
    %v1125 = vpack.c.b16 %v1091, %v1089
    %v1126 = vpack.c.b16 %v1092, %v1090
    %v1127 = vpack.c.b16 %v1095, %v1093
    %v1128 = vpack.c.b16 %v1096, %v1094
    %1161 = vmatpush.bf16.msra.mxu0 %v1111
    %1162 = vmatpush.bf16.msra.mxu0 %v1109
    %1163 = vmatpush.bf16.msra.mxu0 %v1107
    %1164 = vmatpush.bf16.msra.mxu0 %v1105
    %1165 = vmatpush.bf16.msra.mxu0 %v1103
    %1166 = vmatpush.bf16.msra.mxu0 %v1101
    %1167 = vmatpush.bf16.msra.mxu0 %v1099
    %1168 = vmatpush.bf16.msra.mxu0 %v1097
    %1169 = vmatmul.bf16.gmra.mxu0 %v961
    %v1170 = vpop.f32.mrf.mxu0
    %v1171 = vadd.f32 %v997, %v1170
    %v1172 = vpop.f32.mrf.mxu0
    %1173 = vdwg.mxu0
    %1174 = vmatpush.bf16.msra.mxu0 %v1127
    %1175 = vmatpush.bf16.msra.mxu0 %v1125
    %1176 = vmatpush.bf16.msra.mxu0 %v1123
    %1177 = vmatpush.bf16.msra.mxu0 %v1121
    %1178 = vmatpush.bf16.msra.mxu0 %v1119
    %1179 = vmatpush.bf16.msra.mxu0 %v1117
    %1180 = vmatpush.bf16.msra.mxu0 %v1115
    %1181 = vmatpush.bf16.msra.mxu0 %v1113
    %1182 = vmatmul.bf16.gmra.mxu0 %v962
    %v1183 = vpop.f32.mrf.mxu0
    %v1184 = vadd.f32 %v1171, %v1183
    %v1185 = vpop.f32.mrf.mxu0
    %1186 = vdwg.mxu0
    %1187 = vmatpush.bf16.msra.mxu0 %v1112
    %1188 = vmatpush.bf16.msra.mxu0 %v1110
    %1189 = vmatpush.bf16.msra.mxu0 %v1108
    %1190 = vmatpush.bf16.msra.mxu0 %v1106
    %1191 = vmatpush.bf16.msra.mxu0 %v1104
    %1192 = vmatpush.bf16.msra.mxu0 %v1102
    %1193 = vmatpush.bf16.msra.mxu0 %v1100
    %1194 = vmatpush.bf16.msra.mxu0 %v1098
    %1195 = vmatmul.bf16.gmra.mxu0 %v961
    %v1196 = vpop.f32.mrf.mxu0
    %v1197 = vadd.f32 %v998, %v1196
    %v1198 = vpop.f32.mrf.mxu0
    %1199 = vdwg.mxu0
    %1200 = vmatpush.bf16.msra.mxu0 %v1128
    %1201 = vmatpush.bf16.msra.mxu0 %v1126
    %1202 = vmatpush.bf16.msra.mxu0 %v1124
    %1203 = vmatpush.bf16.msra.mxu0 %v1122
    %1204 = vmatpush.bf16.msra.mxu0 %v1120
    %1205 = vmatpush.bf16.msra.mxu0 %v1118
    %1206 = vmatpush.bf16.msra.mxu0 %v1116
    %1207 = vmatpush.bf16.msra.mxu0 %v1114
    %1208 = vmatmul.bf16.gmra.mxu0 %v962
    %v1209 = vpop.f32.mrf.mxu0
    %v1210 = vadd.f32 %v1197, %v1209
    %v1211 = vpop.f32.mrf.mxu0
    %1212 = vdwg.mxu0
    %v1213 = vtanh.pop %v1184
    %v1214 = vtanh.pop %v1210
    %v1215 = vpack.c.bf16 %v1213, %v1213
    %v1216 = vpack.c.bf16 %v1214, %v1214
    %v1217 = vld [vmem:[%s9] sm:$0xf]
    %v1218 = vld [vmem:[%s9 + $0x4] sm:$0xf]
    %v1219 = vld [vmem:[%s9 + $0x8] sm:$0xf]
    %v1220 = vld [vmem:[%s9 + $0xc] sm:$0xf]
    %v1221 = vld [vmem:[%s9 + $0x10] sm:$0xf]
    %v1222 = vld [vmem:[%s9 + $0x14] sm:$0xf]
    %v1223 = vld [vmem:[%s9 + $0x18] sm:$0xf]
    %v1224 = vld [vmem:[%s9 + $0x1c] sm:$0xf]
    %v1225 = vld [vmem:[%s9 + $0x20] sm:$0xf]
    %v1226 = vld [vmem:[%s9 + $0x24] sm:$0xf]
    %v1227 = vld [vmem:[%s9 + $0x28] sm:$0xf]
    %v1228 = vld [vmem:[%s9 + $0x2c] sm:$0xf]
    %v1229 = vld [vmem:[%s9 + $0x30] sm:$0xf]
    %v1230 = vld [vmem:[%s9 + $0x34] sm:$0xf]
    %v1231 = vld [vmem:[%s9 + $0x38] sm:$0xf]
    %v1232 = vld [vmem:[%s9 + $0x3c] sm:$0xf]
    %v1233 = vld [vmem:[%s9 + $0x40] sm:$0xf]
    %v1234 = vld [vmem:[%s9 + $0x44] sm:$0xf]
    %v1235 = vld [vmem:[%s9 + $0x48] sm:$0xf]
    %v1236 = vld [vmem:[%s9 + $0x4c] sm:$0xf]
    %v1237 = vld [vmem:[%s9 + $0x50] sm:$0xf]
    %v1238 = vld [vmem:[%s9 + $0x54] sm:$0xf]
    %v1239 = vld [vmem:[%s9 + $0x58] sm:$0xf]
    %v1240 = vld [vmem:[%s9 + $0x5c] sm:$0xf]
    %v1241 = vld [vmem:[%s9 + $0x60] sm:$0xf]
    %v1242 = vld [vmem:[%s9 + $0x64] sm:$0xf]
    %v1243 = vld [vmem:[%s9 + $0x68] sm:$0xf]
    %v1244 = vld [vmem:[%s9 + $0x6c] sm:$0xf]
    %v1245 = vld [vmem:[%s9 + $0x70] sm:$0xf]
    %v1246 = vld [vmem:[%s9 + $0x74] sm:$0xf]
    %v1247 = vld [vmem:[%s9 + $0x78] sm:$0xf]
    %v1248 = vld [vmem:[%s9 + $0x7c] sm:$0xf]
    %v1249 = vld [vmem:[%s10] sm:$0x1]
    %v1251 = vperm.slane %v1249, 0
    %v1285 = vunpack.c.l.b16 %v1217
    %v1286 = vunpack.c.l.b16 %v1218
    %v1287 = vunpack.c.l.b16 %v1219
    %v1288 = vunpack.c.l.b16 %v1220
    %v1289 = vunpack.c.l.b16 %v1221
    %v1290 = vunpack.c.l.b16 %v1222
    %v1291 = vunpack.c.l.b16 %v1223
    %v1292 = vunpack.c.l.b16 %v1224
    %v1293 = vunpack.c.l.b16 %v1225
    %v1294 = vunpack.c.l.b16 %v1226
    %v1295 = vunpack.c.l.b16 %v1227
    %v1296 = vunpack.c.l.b16 %v1228
    %v1297 = vunpack.c.l.b16 %v1229
    %v1298 = vunpack.c.l.b16 %v1230
    %v1299 = vunpack.c.l.b16 %v1231
    %v1300 = vunpack.c.l.b16 %v1232
    %v1301 = vunpack.c.l.b16 %v1233
    %v1302 = vunpack.c.l.b16 %v1234
    %v1303 = vunpack.c.l.b16 %v1235
    %v1304 = vunpack.c.l.b16 %v1236
    %v1305 = vunpack.c.l.b16 %v1237
    %v1306 = vunpack.c.l.b16 %v1238
    %v1307 = vunpack.c.l.b16 %v1239
    %v1308 = vunpack.c.l.b16 %v1240
    %v1309 = vunpack.c.l.b16 %v1241
    %v1310 = vunpack.c.l.b16 %v1242
    %v1311 = vunpack.c.l.b16 %v1243
    %v1312 = vunpack.c.l.b16 %v1244
    %v1313 = vunpack.c.l.b16 %v1245
    %v1314 = vunpack.c.l.b16 %v1246
    %v1315 = vunpack.c.l.b16 %v1247
    %v1316 = vunpack.c.l.b16 %v1248
    %v1317 = vpack.c.b16 %v1286, %v1285
    %v1318 = vpack.c.b16 %v1288, %v1287
    %v1319 = vpack.c.b16 %v1290, %v1289
    %v1320 = vpack.c.b16 %v1292, %v1291
    %v1321 = vpack.c.b16 %v1294, %v1293
    %v1322 = vpack.c.b16 %v1296, %v1295
    %v1323 = vpack.c.b16 %v1298, %v1297
    %v1324 = vpack.c.b16 %v1300, %v1299
    %v1325 = vpack.c.b16 %v1302, %v1301
    %v1326 = vpack.c.b16 %v1304, %v1303
    %v1327 = vpack.c.b16 %v1306, %v1305
    %v1328 = vpack.c.b16 %v1308, %v1307
    %v1329 = vpack.c.b16 %v1310, %v1309
    %v1330 = vpack.c.b16 %v1312, %v1311
    %v1331 = vpack.c.b16 %v1314, %v1313
    %v1332 = vpack.c.b16 %v1316, %v1315
    %1349 = vmatpush.bf16.msra.mxu0 %v1324
    %1350 = vmatpush.bf16.msra.mxu0 %v1323
    %1351 = vmatpush.bf16.msra.mxu0 %v1322
    %1352 = vmatpush.bf16.msra.mxu0 %v1321
    %1353 = vmatpush.bf16.msra.mxu0 %v1320
    %1354 = vmatpush.bf16.msra.mxu0 %v1319
    %1355 = vmatpush.bf16.msra.mxu0 %v1318
    %1356 = vmatpush.bf16.msra.mxu0 %v1317
    %1357 = vmatmul.bf16.gmra.mxu0 %v1215
    %v1358 = vpop.f32.mrf.mxu0
    %v1359 = vadd.f32 %v1251, %v1358
    %v1360 = vpop.f32.mrf.mxu0
    %1361 = vdwg.mxu0
    %1362 = vmatpush.bf16.msra.mxu0 %v1332
    %1363 = vmatpush.bf16.msra.mxu0 %v1331
    %1364 = vmatpush.bf16.msra.mxu0 %v1330
    %1365 = vmatpush.bf16.msra.mxu0 %v1329
    %1366 = vmatpush.bf16.msra.mxu0 %v1328
    %1367 = vmatpush.bf16.msra.mxu0 %v1327
    %1368 = vmatpush.bf16.msra.mxu0 %v1326
    %1369 = vmatpush.bf16.msra.mxu0 %v1325
    %1370 = vmatmul.bf16.gmra.mxu0 %v1216
    %v1371 = vpop.f32.mrf.mxu0
    %v1372 = vadd.f32 %v1359, %v1371
    %v1373 = vpop.f32.mrf.mxu0
    %1374 = vdwg.mxu0
    %vm1375 = vcmask 39936
    %v1376 = vsel %vm1375, %v1372, -inf
    %1377 = vmax.xlane.f32.xlu0 %v1376
    %v1378 = vpop.xlane.xlu0 %1377
    %v1379 = vsub.f32 %v1372, %v1378
    %v1380 = vmul.f32 %v1379, 1.442695
    %v1381 = vpow.pop %v1380
    %v1382 = vsel %vm1375, %v1381, 0.0
    %1383 = vadd.xlane.f32.xlu0 %v1382
    %v1384 = vpop.xlane.xlu0 %1383
    %v1385 = vrcp.pop %v1384
    %v1386 = vmul.f32 %v1384, %v1385
    %v1387 = vsub.f32 1.0, %v1386
    %v1388 = vmul.f32 %v1385, %v1387
    %v1389 = vadd.f32 %v1385, %v1388
    %vm1390 = vweird.f32 %v1384
    %vm1391 = vweird.f32 %v1385
    %vm1392 = vmor %vm1390, %vm1391
    %v1393 = vsel %vm1392, %v1385, %v1389
    %v1394 = vand.u32 2147483647, %v1384
    %vm1395 = vcmp.eq.f32.partialorder %v1394, 8.507059e+37
    %v1396 = vand.u32 %v1384, 2147483648
    %v1397 = vor.u32 1.1754944e-38, %v1396
    %v1398 = vsel %vm1395, %v1397, %v1393
    %v1399 = vmul.f32 %v1381, %v1398
    %1400 = vst.msk [vmem:[#allocation8] sm:$0xff] %vm1375, %v1399
    // Predicated region
    $region58: #{a2c_actor_forward.1} parent=1 // pred_check
      _
    $region59: #{a2c_actor_forward.1} parent=1 // pred_check_branch
      %1402 = sbr.rel (0) target = $region61
    $region60: #{a2c_actor_forward.1} parent=1 // pred_region
      %1404 = vsyncadd [#allocation4], 0
      %s1406 = sshll.u32 [#allocation8], 4
      %s1407 = int_to_ptr.vmem [resolvable:$true] %s1406
      %s1408 = sshll.u32 %s11, 4
      %s1409 = int_to_ptr.hbm [resolvable:$true] %s1408
      %1411 = dma.vmem_to_hbm [thread:$0]  %s1407, 128, %s1409, [#allocation4]
    $region61: #{a2c_actor_forward.1} parent=1 // pred_fallthru
      _
    // Predicated region
    $region62: #{a2c_actor_forward.1} parent=1 // pred_check
      _
    $region63: #{a2c_actor_forward.1} parent=1 // pred_check_branch
      %1413 = sbr.rel (0) target = $region65
    $region64: #{a2c_actor_forward.1} parent=1 // pred_region
      %1415 = dma.done [#allocation4], 128
    $region65: #{a2c_actor_forward.1} parent=1 // pred_fallthru
      _
    %1416 = vsyncpa [#allocation3], 1
    %1417 = vsyncpa [#allocation6], 1
    %1418 = vsyncpa [#allocation4], 1

</llo_original>
